<compile_context>
chip_gen: v6e
topology: v6e:2x2x1
jax: 0.10.0
libtpu: 0.0.40
codegen_flags: <defaults>
</compile_context>

<pallas_src>
import jax
import jax.numpy as jnp
from jax.experimental import pallas as pl
from jax.experimental.pallas import tpu as pltpu

_LANE = 512          # lane width: large multiple of 128 -> unmasked full-lane stores
_MAX_TILE_ROWS = 512 # (512, 512) f32 tile = 1 MiB per buffer (perf-review sweet spot)


def _gau_noise_add_kernel(x_ref, n_ref, o_ref):
    # Pure streaming elementwise add; noise arrives pre-generated in x's dtype.
    o_ref[...] = x_ref[...] + n_ref[...]


def _round_up(a, b):
    return ((a + b - 1) // b) * b


def gau_noise_blk(x, *, rng, training=True):
    """JAX/Pallas equivalent of GauNoiseBlk.forward.

    x:   (N, C, H, W) float array.
    rng: a jax.random key; must be fresh per call (mirrors torch.randn_like's
         fresh draw each forward).
    """
    if not training:
        # Eval mode: identity, exactly like the PyTorch module.
        return x

    orig_shape = x.shape
    total = x.size

    # Lane-dense flattened view (rows, _LANE); pad the tail if needed.
    rows = -(-total // _LANE)
    if rows <= _MAX_TILE_ROWS:
        tile_rows = rows                 # single block == full array: always legal
        rows_padded = rows
    else:
        tile_rows = _MAX_TILE_ROWS       # divisible by 8; _LANE divisible by 128
        rows_padded = _round_up(rows, tile_rows)
    padded_total = rows_padded * _LANE

    xf = x.reshape(-1)
    if padded_total != total:
        xf = jnp.pad(xf, (0, padded_total - total))
    x2 = xf.reshape(rows_padded, _LANE)

    # Fresh Gaussian noise, generated directly at the padded 2-D shape and in
    # x's dtype (bf16 noise for bf16 activations halves VMEM/vreg pressure).
    noise2 = jax.random.normal(rng, (rows_padded, _LANE), dtype=x.dtype)

    grid = (rows_padded // tile_rows,)
    block = pl.BlockSpec((tile_rows, _LANE), lambda i: (i, 0))

    out2 = pl.pallas_call(
        _gau_noise_add_kernel,
        out_shape=jax.ShapeDtypeStruct((rows_padded, _LANE), x.dtype),
        grid=grid,
        in_specs=[block, block],
        out_specs=pl.BlockSpec((tile_rows, _LANE), lambda i: (i, 0)),
        input_output_aliases={0: 0},     # reuse x2's HBM buffer for the output
        compiler_params=pltpu.CompilerParams(
            dimension_semantics=("parallel",),   # shard rows across TCs on v7x
        ),
        cost_estimate=pl.CostEstimate(
            flops=padded_total,
            transcendentals=0,
            bytes_accessed=3 * padded_total * x.dtype.itemsize,
        ),
    )(x2, noise2)

    return out2.reshape(-1)[:total].reshape(orig_shape)


if __name__ == "__main__":
    key = jax.random.PRNGKey(0)
    kx, kn = jax.random.split(key)
    x = jax.random.normal(kx, (2, 4, 16, 16), dtype=jnp.float32)

    # Training mode: x + Gaussian noise.
    y_train = gau_noise_blk(x, rng=kn, training=True)
    y_train = jax.block_until_ready(y_train)
    assert y_train.shape == x.shape and y_train.dtype == x.dtype
    assert bool(jnp.all(jnp.isfinite(y_train)))

    # The added noise should be nonzero and ~N(0, 1).
    noise_est = y_train - x
    assert bool(jnp.any(jnp.abs(noise_est) > 0.0))
    assert bool(jnp.abs(jnp.mean(noise_est)) < 0.15)
    assert bool((jnp.std(noise_est) > 0.8) & (jnp.std(noise_est) < 1.2))

    # Eval mode: identity.
    y_eval = gau_noise_blk(x, rng=kn, training=False)
    y_eval = jax.block_until_ready(y_eval)
    assert bool(jnp.all(y_eval == x))

    print("KERNEL_OK")
</pallas_src>

<mosaic_0001>
module attributes {stable_mosaic.version = 11 : i64} {
  func.func @_gau_noise_add_kernel(%arg0: i32, %arg1: memref<4x512xf32, #tpu.memory_space<vmem>>, %arg2: memref<4x512xf32, #tpu.memory_space<vmem>>, %arg3: memref<4x512xf32, #tpu.memory_space<vmem>>) attributes {dimension_semantics = [#tpu.dimension_semantics<parallel>], iteration_bounds = array<i64: 1>, scalar_prefetch = 0 : i64, scratch_operands = 0 : i64, tpu.core_type = #tpu.core_type<tc>, window_params = [{transform_indices = @transform_0, window_bounds = array<i64: 4, 512>}, {transform_indices = @transform_1, window_bounds = array<i64: 4, 512>}, {transform_indices = @transform_2, window_bounds = array<i64: 4, 512>}]} {
    %c0 = arith.constant 0 : index
    %c0_0 = arith.constant 0 : index
    %0 = vector.load %arg1[%c0, %c0_0] : memref<4x512xf32, #tpu.memory_space<vmem>>, vector<4x512xf32>
    %c0_1 = arith.constant 0 : index
    %c0_2 = arith.constant 0 : index
    %1 = vector.load %arg2[%c0_1, %c0_2] : memref<4x512xf32, #tpu.memory_space<vmem>>, vector<4x512xf32>
    %2 = arith.addf %0, %1 : vector<4x512xf32>
    %c0_3 = arith.constant 0 : index
    %c0_4 = arith.constant 0 : index
    %3 = vector.load %arg3[%c0_3, %c0_4] : memref<4x512xf32, #tpu.memory_space<vmem>>, vector<4x512xf32>
    tpu.vector_store %arg3[%c0_3, %c0_4], %2 {strides = array<i32>} : memref<4x512xf32, #tpu.memory_space<vmem>>, vector<4x512xf32>,
    return
  }
  func.func @transform_0(%arg0: i32) -> (i32, i32) {
    %c0_i32 = arith.constant 0 : i32
    %c0_i32_0 = arith.constant 0 : i32
    return %arg0, %c0_i32 : i32, i32
  }
  func.func @transform_1(%arg0: i32) -> (i32, i32) {
    %c0_i32 = arith.constant 0 : i32
    %c0_i32_0 = arith.constant 0 : i32
    return %arg0, %c0_i32 : i32, i32
  }
  func.func @transform_2(%arg0: i32) -> (i32, i32) {
    %c0_i32 = arith.constant 0 : i32
    %c0_i32_0 = arith.constant 0 : i32
    return %arg0, %c0_i32 : i32, i32
  }
}

</mosaic_0001>

<llo_original>
// kernel: tpu_custom_call.1
$region0: #{tpu_custom_call.1}
  #allocation0 [shape = 'u32[]', space=smem, size = 0x4, offset = 0x4, fixed_abs, tag = 'smem constant byte address 0x4 - core index']
  #allocation1 [shape = 'u32[144,128]{1,0:T(1,128)}', space=vmem, size = 0x12000, scoped, tag = 'internal scratch']
  %s0 = inlined_call_operand.hbm [shape: f32[4,512], index: 0, kind: input, shape index: {}, may-alias: {0,2}]
  %s1 = inlined_call_operand.vmem [shape: f32[4,512], index: 1, kind: input, shape index: {}]
  %s2 = inlined_call_operand.hbm [shape: f32[4,512], index: 2, kind: output, shape index: {}, may-alias: {0,2}]
  %s3 = sld [smem:[#allocation0]]
  $region22: #{tpu_custom_call.1} parent=0
    _
  %s5 = ssub.s32 1, %s3
  %s6 = scalar_select 0, %s5, %s3
  $region1: #{tpu_custom_call.1} parent=0
    #allocation2 [shape = 'u8[8192]{0}', space=vmem, size = 0x2000, scoped, tag = 'input window, operand 0, single buffered']
    #allocation3 [shape = 's32[1]{0}', space=sflag, size = 0x4, scoped, tag = 'scoped memory for tpu_custom_call.1']
    #allocation4 [shape = 's32[1]{0}', space=sflag, size = 0x4, scoped, tag = 'scoped memory for tpu_custom_call.1']
    #allocation5 [shape = 'u8[8192]{0}', space=vmem, size = 0x2000, scoped, tag = 'output window, operand 0, single buffered']
    %7 = vsyncpa [#allocation3], 0
    %8 = vsyncpa [#allocation4], 0
    // Predicated region
    $region2: #{tpu_custom_call.1} parent=1 // pred_check
      _
    $region3: #{tpu_custom_call.1} parent=1 // pred_check_branch
      %10 = sbr.rel (0) target = $region5
    $region4: #{tpu_custom_call.1} parent=1 // pred_region
      %s12 = ssub.s32 256, 256
      %13 = vsyncadd [#allocation3], %s12
      %s15 = sshll.u32 [#allocation2], 4
      %s16 = int_to_ptr.vmem [resolvable:$true] %s15
      %18 = dma.hbm_to_vmem [thread:$0]  %s0, 256, %s16, [#allocation3]
    $region5: #{tpu_custom_call.1} parent=1 // pred_fallthru
      _
    // Predicated region
    $region6: #{tpu_custom_call.1} parent=1 // pred_check
      _
    $region7: #{tpu_custom_call.1} parent=1 // pred_check_branch
      %20 = sbr.rel (0) target = $region9
    $region8: #{tpu_custom_call.1} parent=1 // pred_region
      _
    $region9: #{tpu_custom_call.1} parent=1 // pred_fallthru
      _
    // Predicated region
    $region10: #{tpu_custom_call.1} parent=1 // pred_check
      _
    $region11: #{tpu_custom_call.1} parent=1 // pred_check_branch
      %22 = sbr.rel (0) target = $region13
    $region12: #{tpu_custom_call.1} parent=1 // pred_region
      %23 = dma.done [#allocation3], 256
    $region13: #{tpu_custom_call.1} parent=1 // pred_fallthru
      _
    %v24 = vld [vmem:[#allocation2] sm:$0xff]
    %v25 = vld [vmem:[#allocation2 + $0x8] sm:$0xff]
    %v26 = vld [vmem:[%s1] sm:$0xff]
    %v27 = vld [vmem:[%s1 + $0x8] sm:$0xff]
    %v28 = vadd.f32 %v24, %v26
    %v29 = vadd.f32 %v25, %v27
    %30 = vst [vmem:[#allocation5] sm:$0xff] %v28
    %31 = vst [vmem:[#allocation5 + $0x8] sm:$0xff] %v29
    // Predicated region
    $region14: #{tpu_custom_call.1} parent=1 // pred_check
      _
    $region15: #{tpu_custom_call.1} parent=1 // pred_check_branch
      %33 = sbr.rel (0) target = $region17
    $region16: #{tpu_custom_call.1} parent=1 // pred_region
      %s35 = ssub.s32 256, 256
      %36 = vsyncadd [#allocation4], %s35
      %s38 = sshll.u32 [#allocation5], 4
      %s39 = int_to_ptr.vmem [resolvable:$true] %s38
      %41 = dma.vmem_to_hbm [thread:$0]  %s39, 256, %s2, [#allocation4]
    $region17: #{tpu_custom_call.1} parent=1 // pred_fallthru
      _
    // Predicated region
    $region18: #{tpu_custom_call.1} parent=1 // pred_check
      _
    $region19: #{tpu_custom_call.1} parent=1 // pred_check_branch
      %43 = sbr.rel (0) target = $region21
    $region20: #{tpu_custom_call.1} parent=1 // pred_region
      %44 = dma.done [#allocation4], 256
    $region21: #{tpu_custom_call.1} parent=1 // pred_fallthru
      _
    %45 = vsyncpa [#allocation3], 1
    %46 = vsyncpa [#allocation4], 1

</llo_original>
